<compile_context>
chip_gen: v7x
topology: tpu7x:2x2x1
jax: 0.10.0
libtpu: 0.0.40
codegen_flags: <defaults>
</compile_context>

<pallas_src>
import functools

import jax
import jax.numpy as jnp
from jax.experimental import pallas as pl
from jax.experimental.pallas import tpu as pltpu


def _round_up(x: int, m: int) -> int:
    return ((x + m - 1) // m) * m


# ----------------------------------------------------------------------------
# Kernel
# ----------------------------------------------------------------------------
def _analyzed_linear_kernel(x_ref, w_ref, b_ref, y_ref, stats_ref, *scratch,
                            batch, nk):
    """Grid = (n, m, k).  K is the matmul reduction axis; M additionally
    carries the batch-statistics reduction (running sum / sum-of-squares)."""
    if nk == 1:
        sum_ref, sumsq_ref = scratch
        acc_ref = None
    else:
        acc_ref, sum_ref, sumsq_ref = scratch

    m = pl.program_id(1)
    k = pl.program_id(2)
    nm = pl.num_programs(1)

    # ---- per-n init of the statistics accumulators -------------------------
    @pl.when(jnp.logical_and(m == 0, k == 0))
    def _():
        sum_ref[...] = jnp.zeros_like(sum_ref)
        sumsq_ref[...] = jnp.zeros_like(sumsq_ref)

    # ---- MXU: native dtype operands, f32 accumulation ----------------------
    part = jnp.dot(x_ref[...], w_ref[...], preferred_element_type=jnp.float32)

    def finalize(acc):
        # acc is the PRE-BIAS result: padded batch rows of x are all zeros,
        # so they contribute exactly 0 to sum/sumsq -> no batch mask needed.
        bias = b_ref[...].astype(jnp.float32)                     # (1, tn)
        y_ref[...] = (acc + bias).astype(y_ref.dtype)
        sum_ref[...] += jnp.sum(acc, axis=0, keepdims=True)        # XLU
        sumsq_ref[...] += jnp.sum(acc * acc, axis=0, keepdims=True)

        # ---- per-n finalize: mean / unbiased std (ddof=1) -------------------
        @pl.when(m == nm - 1)
        def _():
            mean_c = sum_ref[...] * (1.0 / batch)   # mean of (y - bias)
            # ddof=1 like torch.std(); guarded so batch==1 gives 0, not NaN.
            inv_nm1 = 1.0 / max(batch - 1, 1)
            var = (sumsq_ref[...] - batch * mean_c * mean_c) * inv_nm1
            var = jnp.maximum(var, 0.0)
            # Single unmasked (2, tn) store: [mean; std].
            stats_ref[...] = jnp.concatenate(
                [mean_c + bias, jnp.sqrt(var)], axis=0)

    if nk == 1:
        # K collapsed into one block: no accumulator scratch at all.
        finalize(part)
    else:
        @pl.when(k == 0)
        def _():
            acc_ref[...] = part                       # direct store, no zero-init

        @pl.when(jnp.logical_and(k > 0, k != nk - 1))
        def _():
            acc_ref[...] += part

        @pl.when(k == nk - 1)
        def _():
            finalize(acc_ref[...] + part)             # fold last partial on read


# ----------------------------------------------------------------------------
# Tile selection (generation-aware)
# ----------------------------------------------------------------------------
def _tpu_presets(in_bytes: int):
    kind = ""
    try:
        kind = jax.devices()[0].device_kind.lower()
    except Exception:  # pragma: no cover - defensive
        pass
    if "v7" in kind:
        # 64 MiB physical VMEM/TC, 2 TCs/chip, 2x256x256 MXU, 3.2 TB/s HBM.
        return dict(tm_max=256 if in_bytes >= 4 else 512, tn_max=1024,
                    tk_max=1024, align=256, vmem_limit=48 << 20, num_cores=2)
    if "v6" in kind:
        # 128 MiB physical VMEM, 2x256x256 MXU, ~1.4 TB/s HBM.
        return dict(tm_max=512, tn_max=2048, tk_max=2048, align=256,
                    vmem_limit=96 << 20, num_cores=1)
    if "v5" in kind or "v4" in kind:
        # 128 MiB physical VMEM, 4x128x128 MXU, ~0.82 TB/s HBM, 1 vst slot.
        return dict(tm_max=512, tn_max=512, tk_max=2048, align=128,
                    vmem_limit=64 << 20, num_cores=1)
    # Unknown backend: conservative.
    return dict(tm_max=256, tn_max=512, tk_max=1024, align=128,
                vmem_limit=32 << 20, num_cores=1)


def _vmem_bytes(tm, tn, tk, in_bytes, with_acc):
    db = 2  # BlockSpec double buffering
    total = (tm * tk * in_bytes * db        # x tile
             + tk * tn * in_bytes * db      # W tile
             + tn * in_bytes * db           # bias
             + tm * tn * in_bytes * db      # y tile
             + 2 * tn * 4 * db              # stats output
             + 2 * tn * 4)                  # sum / sumsq scratch
    if with_acc:
        total += tm * tn * 4                # f32 accumulator scratch
    return total


def _fit_tiles(B, D_in, D_out, in_bytes, p, tm_cap, tn_cap, tk_cap):
    align = p["align"]
    tm_max = p["tm_max"] if tm_cap is None else min(p["tm_max"], _round_up(tm_cap, 8))
    tn_max = p["tn_max"] if tn_cap is None else min(p["tn_max"], _round_up(tn_cap, 128))
    tk_max = p["tk_max"] if tk_cap is None else min(p["tk_max"], _round_up(tk_cap, 128))
    if tn_cap is not None or tk_cap is not None:
        align = 128  # test hooks may request tiles finer than the MXU-pref align

    tm = min(tm_max, _round_up(B, 8))
    tn_full = _round_up(D_out, align)
    tn = min(tn_max, tn_full)
    # v7x: make sure the "parallel" N axis has >= 2 tiles so both TCs work.
    if p["num_cores"] >= 2 and tn >= tn_full and D_out > align:
        tn = max(align, _round_up(-(-D_out // 2), align))

    budget = int(p["vmem_limit"] * 0.8)
    K_full = _round_up(D_in, align)
    if tk_cap is None:
        tk = K_full  # try to collapse K into a single block
        if _vmem_bytes(tm, tn, tk, in_bytes, with_acc=False) > budget:
            tk = min(tk_max, K_full)
    else:
        tk = min(tk_max, K_full)

    # Shrink (tk -> tn -> tm) until the working set fits the VMEM budget.
    while _vmem_bytes(tm, tn, tk, in_bytes, with_acc=(tk < K_full)) > budget:
        if tk > align:
            tk = max(align, _round_up(tk // 2, align))
        elif tn > align:
            tn = max(align, _round_up(tn // 2, align))
        elif tm > 8:
            tm = max(8, _round_up(tm // 2, 8))
        else:
            break
    return tm, tn, tk


# ----------------------------------------------------------------------------
# Wrapper
# ----------------------------------------------------------------------------
@functools.partial(jax.jit, static_argnames=("tm_cap", "tn_cap", "tk_cap"))
def analyzed_linear(x, weight_t, bias, *, tm_cap=None, tn_cap=None, tk_cap=None):
    """Forward pass of AnalyzedLinear.

    Args:
      x:        (B, D_in)     input activations (f32 or bf16).
      weight_t: (D_in, D_out) transposed nn.Linear weight.
      bias:     (D_out,) or (1, D_out) bias.
      tm_cap/tn_cap/tk_cap:   optional tile-size overrides (testing only).

    Returns:
      y:    (B, D_out)  = x @ weight_t + bias        (module return value)
      mean: (1, D_out)  per-output-column batch mean  } module's
      std:  (1, D_out)  per-output-column batch std   } self.distribution
    """
    B, D_in = x.shape
    D_out = weight_t.shape[1]
    bias2 = bias.reshape(1, D_out)

    in_bytes = jnp.dtype(x.dtype).itemsize
    presets = _tpu_presets(in_bytes)
    tm, tn, tk = _fit_tiles(B, D_in, D_out, in_bytes, presets,
                            tm_cap, tn_cap, tk_cap)

    B_p = _round_up(B, tm)
    K_p = _round_up(D_in, tk)
    N_p = _round_up(D_out, tn)

    # Pad only the arrays/dims that actually need it (padding is a full HBM
    # round trip of the operand -- skip it for aligned shapes).
    x_p = x if (B_p == B and K_p == D_in) else jnp.pad(
        x, ((0, B_p - B), (0, K_p - D_in)))
    w_p = weight_t if (K_p == D_in and N_p == D_out) else jnp.pad(
        weight_t, ((0, K_p - D_in), (0, N_p - D_out)))
    b_p = bias2 if N_p == D_out else jnp.pad(bias2, ((0, 0), (0, N_p - D_out)))

    grid = (N_p // tn, B_p // tm, K_p // tk)
    nk = grid[2]

    scratch_shapes = [pltpu.VMEM((1, tn), jnp.float32),   # running column sum
                      pltpu.VMEM((1, tn), jnp.float32)]   # running sum of squares
    if nk > 1:
        scratch_shapes = [pltpu.VMEM((tm, tn), jnp.float32)] + scratch_shapes

    kernel = functools.partial(_analyzed_linear_kernel, batch=B, nk=nk)

    y_p, stats = pl.pallas_call(
        kernel,
        out_shape=(
            jax.ShapeDtypeStruct((B_p, N_p), x.dtype),      # y (native dtype)
            jax.ShapeDtypeStruct((2, N_p), jnp.float32),    # [mean; std]
        ),
        grid_spec=pltpu.PrefetchScalarGridSpec(
            num_scalar_prefetch=0,
            grid=grid,
            in_specs=[
                pl.BlockSpec((tm, tk), lambda n, m, k: (m, k)),   # x
                pl.BlockSpec((tk, tn), lambda n, m, k: (k, n)),   # W^T
                pl.BlockSpec((1, tn), lambda n, m, k: (0, n)),    # bias
            ],
            out_specs=[
                pl.BlockSpec((tm, tn), lambda n, m, k: (m, n)),   # y tile
                pl.BlockSpec((2, tn), lambda n, m, k: (0, n)),    # stats slab
            ],
            scratch_shapes=scratch_shapes,
        ),
        compiler_params=pltpu.CompilerParams(
            dimension_semantics=("parallel", "arbitrary", "arbitrary"),
            vmem_limit_bytes=presets["vmem_limit"]),
    )(x_p, w_p, b_p)

    y = y_p[:B, :D_out]
    mean = stats[0:1, :D_out]
    std = stats[1:2, :D_out]
    return y, mean, std


if __name__ == "__main__":
    # TODO(synk): the module's self.outputs dict / .item() host transfers /
    # plot_dist (matplotlib/seaborn) have no kernel equivalent; mean/std are
    # returned as arrays instead of a Python dict.

    # ---- small shapes implied by the module: x is (batch, input_dim) -------
    batch, input_dim, output_dim = 8, 32, 16

    key = jax.random.PRNGKey(0)
    kx, kw, kb = jax.random.split(key, 3)
    x = jax.random.normal(kx, (batch, input_dim), dtype=jnp.float32)

    # Deterministic nn.Linear-style init: U(-1/sqrt(in), 1/sqrt(in)).
    bound = 1.0 / (input_dim ** 0.5)
    weight = jax.random.uniform(kw, (output_dim, input_dim),
                                dtype=jnp.float32, minval=-bound, maxval=bound)
    bias = jax.random.uniform(kb, (output_dim,),
                              dtype=jnp.float32, minval=-bound, maxval=bound)
    weight_t = weight.T

    y, mean, std = analyzed_linear(x, weight_t, bias)
    jax.block_until_ready((y, mean, std))

    y_ref = jnp.dot(x, weight_t, precision=jax.lax.Precision.HIGHEST) + bias[None, :]
    mean_ref = jnp.mean(y_ref, axis=0, keepdims=True)
    std_ref = jnp.std(y_ref, axis=0, keepdims=True, ddof=1)
    assert jnp.allclose(y, y_ref, atol=1e-4, rtol=1e-4)
    assert jnp.allclose(mean, mean_ref, atol=1e-4, rtol=1e-4)
    assert jnp.allclose(std, std_ref, atol=1e-4, rtol=1e-4)

    # ---- exercise padding + K-collapse path (default tiles) ----------------
    B2, Din2, Dout2 = 300, 384, 200
    k2x, k2w, k2b = jax.random.split(jax.random.PRNGKey(1), 3)
    x2 = jax.random.normal(k2x, (B2, Din2), dtype=jnp.float32)
    bound2 = 1.0 / (Din2 ** 0.5)
    w2 = jax.random.uniform(k2w, (Dout2, Din2), dtype=jnp.float32,
                            minval=-bound2, maxval=bound2)
    b2 = jax.random.uniform(k2b, (Dout2,), dtype=jnp.float32,
                            minval=-bound2, maxval=bound2)
    y2, mean2, std2 = analyzed_linear(x2, w2.T, b2)
    jax.block_until_ready((y2, mean2, std2))

    y2_ref = jnp.dot(x2, w2.T, precision=jax.lax.Precision.HIGHEST) + b2[None, :]
    assert jnp.allclose(y2, y2_ref, atol=1e-3, rtol=1e-3)
    assert jnp.allclose(mean2, jnp.mean(y2_ref, axis=0, keepdims=True),
                        atol=1e-3, rtol=1e-3)
    assert jnp.allclose(std2, jnp.std(y2_ref, axis=0, keepdims=True, ddof=1),
                        atol=1e-3, rtol=1e-3)

    # ---- force the multi-tile (nm>1, nk>1, nn>1, padded batch) path --------
    B3, Din3, Dout3 = 40, 256, 256
    k3x, k3w, k3b = jax.random.split(jax.random.PRNGKey(2), 3)
    x3 = jax.random.normal(k3x, (B3, Din3), dtype=jnp.float32)
    bound3 = 1.0 / (Din3 ** 0.5)
    w3 = jax.random.uniform(k3w, (Dout3, Din3), dtype=jnp.float32,
                            minval=-bound3, maxval=bound3)
    b3 = jax.random.uniform(k3b, (Dout3,), dtype=jnp.float32,
                            minval=-bound3, maxval=bound3)
    y3, mean3, std3 = analyzed_linear(x3, w3.T, b3,
                                      tm_cap=16, tn_cap=128, tk_cap=128)
    jax.block_until_ready((y3, mean3, std3))

    y3_ref = jnp.dot(x3, w3.T, precision=jax.lax.Precision.HIGHEST) + b3[None, :]
    assert jnp.allclose(y3, y3_ref, atol=1e-3, rtol=1e-3)
    assert jnp.allclose(mean3, jnp.mean(y3_ref, axis=0, keepdims=True),
                        atol=1e-3, rtol=1e-3)
    assert jnp.allclose(std3, jnp.std(y3_ref, axis=0, keepdims=True, ddof=1),
                        atol=1e-3, rtol=1e-3)

    print("KERNEL_OK")
</pallas_src>

<mosaic_0001>
module attributes {stable_mosaic.version = 11 : i64} {
  func.func @_analyzed_linear_kernel(%arg0: i32, %arg1: i32, %arg2: i32, %arg3: memref<8x128xf32, #tpu.memory_space<vmem>>, %arg4: memref<128x128xf32, #tpu.memory_space<vmem>>, %arg5: memref<1x128xf32, #tpu.memory_space<vmem>>, %arg6: memref<8x128xf32, #tpu.memory_space<vmem>>, %arg7: memref<2x128xf32, #tpu.memory_space<vmem>>, %arg8: memref<1x128xf32, #tpu.memory_space<vmem>>, %arg9: memref<1x128xf32, #tpu.memory_space<vmem>>) attributes {dimension_semantics = [#tpu.dimension_semantics<parallel>, #tpu.dimension_semantics<arbitrary>, #tpu.dimension_semantics<arbitrary>], iteration_bounds = array<i64: 1, 1, 1>, scalar_prefetch = 0 : i64, scratch_operands = 2 : i64, tpu.core_type = #tpu.core_type<tc>, window_params = [{transform_indices = @transform_0, window_bounds = array<i64: 8, 128>}, {transform_indices = @transform_1, window_bounds = array<i64: 128, 128>}, {transform_indices = @transform_2, window_bounds = array<i64: 1, 128>}, {transform_indices = @transform_3, window_bounds = array<i64: 8, 128>}, {transform_indices = @transform_4, window_bounds = array<i64: 2, 128>}]} {
    %c0_i32 = arith.constant 0 : i32
    %0 = arith.cmpi eq, %arg1, %c0_i32 : i32
    %c0_i32_0 = arith.constant 0 : i32
    %1 = arith.cmpi eq, %arg2, %c0_i32_0 : i32
    %2 = arith.andi %0, %1 : i1
    %3 = arith.extui %2 : i1 to i32
    %c0_i32_1 = arith.constant 0 : i32
    %4 = arith.cmpi ne, %3, %c0_i32_1 : i32
    scf.if %4 {
      %cst_21 = arith.constant 0.000000e+00 : f32
      %26 = vector.broadcast %cst_21 : f32 to vector<1x128xf32>
      %c0_22 = arith.constant 0 : index
      %c0_23 = arith.constant 0 : index
      %27 = vector.load %arg8[%c0_22, %c0_23] : memref<1x128xf32, #tpu.memory_space<vmem>>, vector<1x128xf32>
      tpu.vector_store %arg8[%c0_22, %c0_23], %26 {strides = array<i32>} : memref<1x128xf32, #tpu.memory_space<vmem>>, vector<1x128xf32>,
      %cst_24 = arith.constant 0.000000e+00 : f32
      %28 = vector.broadcast %cst_24 : f32 to vector<1x128xf32>
      %c0_25 = arith.constant 0 : index
      %c0_26 = arith.constant 0 : index
      %29 = vector.load %arg9[%c0_25, %c0_26] : memref<1x128xf32, #tpu.memory_space<vmem>>, vector<1x128xf32>
      tpu.vector_store %arg9[%c0_25, %c0_26], %28 {strides = array<i32>} : memref<1x128xf32, #tpu.memory_space<vmem>>, vector<1x128xf32>,
    } else {
    }
    %c0 = arith.constant 0 : index
    %c0_2 = arith.constant 0 : index
    %5 = vector.load %arg3[%c0, %c0_2] : memref<8x128xf32, #tpu.memory_space<vmem>>, vector<8x128xf32>
    %c0_3 = arith.constant 0 : index
    %c0_4 = arith.constant 0 : index
    %6 = vector.load %arg4[%c0_3, %c0_4] : memref<128x128xf32, #tpu.memory_space<vmem>>, vector<128x128xf32>
    %cst = arith.constant dense<0.000000e+00> : vector<8x128xf32>
    %7 = tpu.matmul %5, %6, %cst {dimension_numbers = #tpu.dot_dimension_numbers<[1], [0], [0], [1], [0, 0, 1, 1], [], []>} : vector<8x128xf32>, vector<128x128xf32>, vector<8x128xf32> -> vector<8x128xf32>
    %c0_5 = arith.constant 0 : index
    %c0_6 = arith.constant 0 : index
    %8 = vector.load %arg5[%c0_5, %c0_6] : memref<1x128xf32, #tpu.memory_space<vmem>>, vector<1x128xf32>
    %9 = vector.broadcast %8 : vector<1x128xf32> to vector<8x128xf32>
    %10 = arith.addf %7, %9 : vector<8x128xf32>
    %c0_7 = arith.constant 0 : index
    %c0_8 = arith.constant 0 : index
    %11 = vector.load %arg6[%c0_7, %c0_8] : memref<8x128xf32, #tpu.memory_space<vmem>>, vector<8x128xf32>
    tpu.vector_store %arg6[%c0_7, %c0_8], %10 {strides = array<i32>} : memref<8x128xf32, #tpu.memory_space<vmem>>, vector<8x128xf32>,
    %c0_9 = arith.constant 0 : index
    %c0_10 = arith.constant 0 : index
    %12 = vector.load %arg8[%c0_9, %c0_10] : memref<1x128xf32, #tpu.memory_space<vmem>>, vector<1x128xf32>
    %cst_11 = arith.constant dense<0.000000e+00> : vector<128xf32>
    %13 = vector.multi_reduction <add>, %7, %cst_11 [0] : vector<8x128xf32> to vector<128xf32>
    %14 = vector.shape_cast %13 : vector<128xf32> to vector<1x128xf32>
    %15 = arith.addf %12, %14 : vector<1x128xf32>
    %c0_12 = arith.constant 0 : index
    %c0_13 = arith.constant 0 : index
    %16 = vector.load %arg8[%c0_12, %c0_13] : memref<1x128xf32, #tpu.memory_space<vmem>>, vector<1x128xf32>
    tpu.vector_store %arg8[%c0_12, %c0_13], %15 {strides = array<i32>} : memref<1x128xf32, #tpu.memory_space<vmem>>, vector<1x128xf32>,
    %c0_14 = arith.constant 0 : index
    %c0_15 = arith.constant 0 : index
    %17 = vector.load %arg9[%c0_14, %c0_15] : memref<1x128xf32, #tpu.memory_space<vmem>>, vector<1x128xf32>
    %18 = arith.mulf %7, %7 : vector<8x128xf32>
    %cst_16 = arith.constant dense<0.000000e+00> : vector<128xf32>
    %19 = vector.multi_reduction <add>, %18, %cst_16 [0] : vector<8x128xf32> to vector<128xf32>
    %20 = vector.shape_cast %19 : vector<128xf32> to vector<1x128xf32>
    %21 = arith.addf %17, %20 : vector<1x128xf32>
    %c0_17 = arith.constant 0 : index
    %c0_18 = arith.constant 0 : index
    %22 = vector.load %arg9[%c0_17, %c0_18] : memref<1x128xf32, #tpu.memory_space<vmem>>, vector<1x128xf32>
    tpu.vector_store %arg9[%c0_17, %c0_18], %21 {strides = array<i32>} : memref<1x128xf32, #tpu.memory_space<vmem>>, vector<1x128xf32>,
    %c0_i32_19 = arith.constant 0 : i32
    %23 = arith.cmpi eq, %arg1, %c0_i32_19 : i32
    %24 = arith.extui %23 : i1 to i32
    %c0_i32_20 = arith.constant 0 : i32
    %25 = arith.cmpi ne, %24, %c0_i32_20 : i32
    scf.if %25 {
      %c0_21 = arith.constant 0 : index
      %c0_22 = arith.constant 0 : index
      %26 = vector.load %arg8[%c0_21, %c0_22] : memref<1x128xf32, #tpu.memory_space<vmem>>, vector<1x128xf32>
      %cst_23 = arith.constant 1.250000e-01 : f32
      %27 = vector.broadcast %cst_23 : f32 to vector<1x128xf32>
      %28 = arith.mulf %26, %27 : vector<1x128xf32>
      %c0_24 = arith.constant 0 : index
      %c0_25 = arith.constant 0 : index
      %29 = vector.load %arg9[%c0_24, %c0_25] : memref<1x128xf32, #tpu.memory_space<vmem>>, vector<1x128xf32>
      %cst_26 = arith.constant 8.000000e+00 : f32
      %30 = vector.broadcast %cst_26 : f32 to vector<1x128xf32>
      %31 = arith.mulf %30, %28 : vector<1x128xf32>
      %32 = arith.mulf %31, %28 : vector<1x128xf32>
      %33 = arith.subf %29, %32 : vector<1x128xf32>
      %cst_27 = arith.constant 0.142857149 : f32
      %34 = vector.broadcast %cst_27 : f32 to vector<1x128xf32>
      %35 = arith.mulf %33, %34 : vector<1x128xf32>
      %cst_28 = arith.constant 0.000000e+00 : f32
      %36 = vector.broadcast %cst_28 : f32 to vector<1x128xf32>
      %37 = arith.maximumf %35, %36 : vector<1x128xf32>
      %38 = arith.addf %28, %8 : vector<1x128xf32>
      %39 = math.sqrt %37 : vector<1x128xf32>
      %40 = tpu.concatenate %38, %39 in 0 : vector<1x128xf32>, vector<1x128xf32> -> vector<2x128xf32>
      %c0_29 = arith.constant 0 : index
      %c0_30 = arith.constant 0 : index
      %41 = vector.load %arg7[%c0_29, %c0_30] : memref<2x128xf32, #tpu.memory_space<vmem>>, vector<2x128xf32>
      tpu.vector_store %arg7[%c0_29, %c0_30], %40 {strides = array<i32>} : memref<2x128xf32, #tpu.memory_space<vmem>>, vector<2x128xf32>,
    } else {
    }
    return
  }
  func.func @transform_0(%arg0: i32, %arg1: i32, %arg2: i32) -> (i32, i32) {
    %c0_i32 = arith.constant 0 : i32
    return %arg1, %arg2 : i32, i32
  }
  func.func @transform_1(%arg0: i32, %arg1: i32, %arg2: i32) -> (i32, i32) {
    %c0_i32 = arith.constant 0 : i32
    return %arg2, %arg0 : i32, i32
  }
  func.func @transform_2(%arg0: i32, %arg1: i32, %arg2: i32) -> (i32, i32) {
    %c0_i32 = arith.constant 0 : i32
    %c0_i32_0 = arith.constant 0 : i32
    return %c0_i32, %arg0 : i32, i32
  }
  func.func @transform_3(%arg0: i32, %arg1: i32, %arg2: i32) -> (i32, i32) {
    %c0_i32 = arith.constant 0 : i32
    return %arg1, %arg0 : i32, i32
  }
  func.func @transform_4(%arg0: i32, %arg1: i32, %arg2: i32) -> (i32, i32) {
    %c0_i32 = arith.constant 0 : i32
    %c0_i32_0 = arith.constant 0 : i32
    return %c0_i32, %arg0 : i32, i32
  }
}

</mosaic_0001>

<llo_original>
// kernel: analyzed_linear.1
$region0: #{analyzed_linear.1}
  #allocation0 [shape = 'u32[]', space=smem, size = 0x4, offset = 0x4, fixed_abs, tag = 'smem constant byte address 0x4 - core index']
  #allocation1 [shape = 'u32[144,128]{1,0:T(1,128)}', space=vmem, size = 0x12000, scoped, tag = 'internal scratch']
  #allocation2 [shape = 'f32[1,128]{1,0:T(1,128)}', space=vmem, size = 0x200, scoped, tag = 'scratch operand']
  #allocation3 [shape = 'f32[1,128]{1,0:T(1,128)}', space=vmem, size = 0x200, scoped, tag = 'scratch operand']
  %s0 = inlined_call_operand.vmem [shape: f32[8,128], index: 0, kind: input, shape index: {}]
  %s1 = inlined_call_operand.vmem [shape: f32[128,128], index: 1, kind: input, shape index: {}]
  %s2 = inlined_call_operand.vmem [shape: f32[1,128], index: 2, kind: input, shape index: {}]
  %s3 = inlined_call_operand.hbm [shape: f32[8,128], index: 3, kind: output, shape index: {0}]
  %s4 = inlined_call_operand.vmem [shape: f32[2,128], index: 4, kind: output, shape index: {1}]
  %5 = xla_tuple %s3, %s4
  %s6 = sld [smem:[#allocation0]]
  $region38: #{analyzed_linear.1} parent=0
    _
  %s8 = ssub.s32 1, %s6
  %s9 = scalar_select 0, %s8, %s6
  $region1: #{analyzed_linear.1} parent=0
    #allocation4 [shape = 'u8[4096]{0}', space=vmem, size = 0x1000, scoped, tag = 'output window, operand 0, single buffered']
    #allocation5 [shape = 's32[1]{0}', space=sflag, size = 0x4, scoped, tag = 'scoped memory for analyzed_linear.1']
    %10 = vsyncpa [#allocation5], 0
    // Predicated region
    $region2: #{analyzed_linear.1} parent=1 // pred_check
      _
    $region3: #{analyzed_linear.1} parent=1 // pred_check_branch
      %12 = sbr.rel (0) target = $region5
    $region4: #{analyzed_linear.1} parent=1 // pred_region
      _
    $region5: #{analyzed_linear.1} parent=1 // pred_fallthru
      _
    // Predicated region
    $region6: #{analyzed_linear.1} parent=1 // pred_check
      _
    $region7: #{analyzed_linear.1} parent=1 // pred_check_branch
      %14 = sbr.rel (0) target = $region9
    $region8: #{analyzed_linear.1} parent=1 // pred_region
      _
    $region9: #{analyzed_linear.1} parent=1 // pred_fallthru
      _
    // Predicated region
    $region10: #{analyzed_linear.1} parent=1 // pred_check
      _
    $region11: #{analyzed_linear.1} parent=1 // pred_check_branch
      %16 = sbr.rel (0) target = $region13
    $region12: #{analyzed_linear.1} parent=1 // pred_region
      _
    $region13: #{analyzed_linear.1} parent=1 // pred_fallthru
      _
    %p17 = scmp.eq.s32.totalorder 0, 0
    %p18 = scmp.eq.s32.totalorder 0, 0
    %p19 = pnand %p17, %p18
    %p20 = pneg %p19
    // Predicated region
    $region14: #{analyzed_linear.1} parent=1 // pred_check
      _
    $region15: #{analyzed_linear.1} parent=1 // pred_check_branch
      %22 = sbr.rel (%p19) target = $region17
    $region16: #{analyzed_linear.1} parent=1 // pred_region
      %23 = vst [vmem:[#allocation2] sm:$0x1] 0.0
      %24 = vst [vmem:[#allocation3] sm:$0x1] 0.0
    $region17: #{analyzed_linear.1} parent=1 // pred_fallthru
      _
    %v25 = vld [vmem:[%s0] sm:$0xff]
    %v26 = vld [vmem:[%s1] sm:$0xff]
    %v27 = vld [vmem:[%s1 + $0x8] sm:$0xff]
    %v28 = vld [vmem:[%s1 + $0x10] sm:$0xff]
    %v29 = vld [vmem:[%s1 + $0x18] sm:$0xff]
    %v30 = vld [vmem:[%s1 + $0x20] sm:$0xff]
    %v31 = vld [vmem:[%s1 + $0x28] sm:$0xff]
    %v32 = vld [vmem:[%s1 + $0x30] sm:$0xff]
    %v33 = vld [vmem:[%s1 + $0x38] sm:$0xff]
    %v34 = vld [vmem:[%s1 + $0x40] sm:$0xff]
    %v35 = vld [vmem:[%s1 + $0x48] sm:$0xff]
    %v36 = vld [vmem:[%s1 + $0x50] sm:$0xff]
    %v37 = vld [vmem:[%s1 + $0x58] sm:$0xff]
    %v38 = vld [vmem:[%s1 + $0x60] sm:$0xff]
    %v39 = vld [vmem:[%s1 + $0x68] sm:$0xff]
    %v40 = vld [vmem:[%s1 + $0x70] sm:$0xff]
    %v41 = vld [vmem:[%s1 + $0x78] sm:$0xff]
    %42 = vmatprep.subr.mxu0 0.0
    %43 = vmatpush1.msra.mxu0 %v26
    %44 = vmatprep.subr.mxu0 0.0
    %45 = vmatpush1.msra.mxu0 %v27
    %46 = vmatprep.subr.mxu0 0.0
    %47 = vmatpush1.msra.mxu0 %v28
    %48 = vmatprep.subr.mxu0 0.0
    %49 = vmatpush1.msra.mxu0 %v29
    %50 = vmatprep.subr.mxu0 0.0
    %51 = vmatpush1.msra.mxu0 %v30
    %52 = vmatprep.subr.mxu0 0.0
    %53 = vmatpush1.msra.mxu0 %v31
    %54 = vmatprep.subr.mxu0 0.0
    %55 = vmatpush1.msra.mxu0 %v32
    %56 = vmatprep.subr.mxu0 0.0
    %57 = vmatpush1.msra.mxu0 %v33
    %58 = vmatprep.subr.mxu0 0.0
    %59 = vmatpush1.msra.mxu0 %v34
    %60 = vmatprep.subr.mxu0 0.0
    %61 = vmatpush1.msra.mxu0 %v35
    %62 = vmatprep.subr.mxu0 0.0
    %63 = vmatpush1.msra.mxu0 %v36
    %64 = vmatprep.subr.mxu0 0.0
    %65 = vmatpush1.msra.mxu0 %v37
    %66 = vmatprep.subr.mxu0 0.0
    %67 = vmatpush1.msra.mxu0 %v38
    %68 = vmatprep.subr.mxu0 0.0
    %69 = vmatpush1.msra.mxu0 %v39
    %70 = vmatprep.subr.mxu0 0.0
    %71 = vmatpush1.msra.mxu0 %v40
    %72 = vmatprep.subr.mxu0 0.0
    %73 = vmatpush1.msra.mxu0 %v41
    %74 = vmatprep.subr.mxu0 0.0
    %75 = vmatpush1.msra.mxu0 0.0
    %76 = vmatprep.subr.mxu0 0.0
    %77 = vmatpush1.msra.mxu0 0.0
    %78 = vmatprep.subr.mxu0 0.0
    %79 = vmatpush1.msra.mxu0 0.0
    %80 = vmatprep.subr.mxu0 0.0
    %81 = vmatpush1.msra.mxu0 0.0
    %82 = vmatprep.subr.mxu0 0.0
    %83 = vmatpush1.msra.mxu0 0.0
    %84 = vmatprep.subr.mxu0 0.0
    %85 = vmatpush1.msra.mxu0 0.0
    %86 = vmatprep.subr.mxu0 0.0
    %87 = vmatpush1.msra.mxu0 0.0
    %88 = vmatprep.subr.mxu0 0.0
    %89 = vmatpush1.msra.mxu0 0.0
    %90 = vmatprep.subr.mxu0 0.0
    %91 = vmatpush1.msra.mxu0 0.0
    %92 = vmatprep.subr.mxu0 0.0
    %93 = vmatpush1.msra.mxu0 0.0
    %94 = vmatprep.subr.mxu0 0.0
    %95 = vmatpush1.msra.mxu0 0.0
    %96 = vmatprep.subr.mxu0 0.0
    %97 = vmatpush1.msra.mxu0 0.0
    %98 = vmatprep.subr.mxu0 0.0
    %99 = vmatpush1.msra.mxu0 0.0
    %100 = vmatprep.subr.mxu0 0.0
    %101 = vmatpush1.msra.mxu0 0.0
    %102 = vmatprep.subr.mxu0 0.0
    %103 = vmatpush1.msra.mxu0 0.0
    %104 = vmatprep.subr.mxu0 0.0
    %105 = vmatpush1.msra.mxu0 0.0
    %106 = vmatprep.mubr.f32.mxu0 0.0
    %107 = vmatmul.mubr.f32.gmra.mrb[0].mxu0 %v25
    %v108 = vpop.f32.mrb[0].mxu0
    %v109 = vadd.f32 0.0, %v108
    %v110 = vpop.f32.mrb[0].mxu0
    %111 = vdwg.mxu0
    %v112 = vld [vmem:[%s2] sm:$0x1]
    %v114 = vlaneseq
    %v115 = vshrl.u32 %v114, 7
    %v116 = vsub.s32 0, %v115
    %v117 = vrot.slane %v112, %v116
    %v119 = vadd.f32 %v109, %v117
    %120 = vst [vmem:[#allocation4] sm:$0xff] %v119
    %v121 = vld [vmem:[#allocation2] sm:$0x1]
    %v122 = vrot.slane %v109, 4
    %v123 = vadd.f32 %v109, %v122
    %v124 = vrot.slane %v123, 2
    %v125 = vadd.f32 %v123, %v124
    %v126 = vrot.slane %v125, 1
    %v127 = vadd.f32 %v125, %v126
    %v128 = vadd.f32 %v121, %v127
    %129 = vst [vmem:[#allocation2] sm:$0x1] %v128
    %v130 = vld [vmem:[#allocation3] sm:$0x1]
    %v131 = vmul.f32 %v109, %v109
    %v132 = vrot.slane %v131, 4
    %v133 = vadd.f32 %v131, %v132
    %v134 = vrot.slane %v133, 2
    %v135 = vadd.f32 %v133, %v134
    %v136 = vrot.slane %v135, 1
    %v137 = vadd.f32 %v135, %v136
    %v138 = vadd.f32 %v130, %v137
    %139 = vst [vmem:[#allocation3] sm:$0x1] %v138
    // Predicated region
    $region18: #{analyzed_linear.1} parent=1 // pred_check
      %p140 = pneg %p17
    $region19: #{analyzed_linear.1} parent=1 // pred_check_branch
      %142 = sbr.rel (%p140) target = $region21
    $region20: #{analyzed_linear.1} parent=1 // pred_region
      %v143 = vld [vmem:[#allocation2] sm:$0x1]
      %v144 = vmul.f32 %v143, 0.125
      %v145 = vld [vmem:[#allocation3] sm:$0x1]
      %v146 = vmul.f32 %v144, 8.0
      %v147 = vmul.f32 %v146, %v144
      %v148 = vsub.f32 %v145, %v147
      %v149 = vmul.f32 %v148, 0.14285715
      %v150 = vmax.f32 %v149, 0.0
      %v151 = vadd.f32 %v144, %v112
      %v152 = vrsqrt.pop %v150
      %v153 = vmul.f32 %v150, %v152
      %vm154 = vcmp.eq.f32.partialorder %v150, inf
      %v155 = vsel %vm154, %v150, %v153
      %vm156 = vcmp.eq.f32.partialorder %v150, 0.0
      %v157 = vand.u32 %v150, 2147483648
      %v158 = vsel %vm156, %v157, %v155
      %v160 = vlaneseq
      %v161 = vshrl.u32 %v160, 7
      %v162 = vsub.s32 0, %v161
      %v163 = vrot.slane %v158, %v162
      %vm165 = vcmask 1040384
      %v166 = vsel %vm165, %v151, %v163
      %167 = vst [vmem:[%s4] sm:$0x3] %v166
    $region21: #{analyzed_linear.1} parent=1 // pred_fallthru
      _
    // Predicated region
    $region22: #{analyzed_linear.1} parent=1 // pred_check
      _
    $region23: #{analyzed_linear.1} parent=1 // pred_check_branch
      %169 = sbr.rel (0) target = $region25
    $region24: #{analyzed_linear.1} parent=1 // pred_region
      %s171 = ssub.s32 128, 128
      %172 = vsyncadd [#allocation5], %s171
      %s174 = sshll.u32 [#allocation4], 4
      %s175 = int_to_ptr.vmem [resolvable:$true] %s174
      %177 = dma.vmem_to_hbm [thread:$0]  %s175, 128, %s3, [#allocation5]
    $region25: #{analyzed_linear.1} parent=1 // pred_fallthru
      _
    // Predicated region
    $region26: #{analyzed_linear.1} parent=1 // pred_check
      _
    $region27: #{analyzed_linear.1} parent=1 // pred_check_branch
      %179 = sbr.rel (0) target = $region29
    $region28: #{analyzed_linear.1} parent=1 // pred_region
      _
    $region29: #{analyzed_linear.1} parent=1 // pred_fallthru
      _
    // Predicated region
    $region30: #{analyzed_linear.1} parent=1 // pred_check
      _
    $region31: #{analyzed_linear.1} parent=1 // pred_check_branch
      %181 = sbr.rel (0) target = $region33
    $region32: #{analyzed_linear.1} parent=1 // pred_region
      %182 = dma.done [#allocation5], 128
    $region33: #{analyzed_linear.1} parent=1 // pred_fallthru
      _
    // Predicated region
    $region34: #{analyzed_linear.1} parent=1 // pred_check
      _
    $region35: #{analyzed_linear.1} parent=1 // pred_check_branch
      %184 = sbr.rel (0) target = $region37
    $region36: #{analyzed_linear.1} parent=1 // pred_region
      _
    $region37: #{analyzed_linear.1} parent=1 // pred_fallthru
      _
    %185 = vsyncpa [#allocation5], 1

</llo_original>
